<compile_context>
chip_gen: v7x
topology: tpu7x:2x2x1
jax: 0.10.0
libtpu: 0.0.40
codegen_flags: <defaults>
</compile_context>

<pallas_src>
import functools

import jax
import jax.numpy as jnp
import numpy as np
from jax.experimental import pallas as pl
from jax.experimental.pallas import tpu as pltpu


# ----------------------------------------------------------------------------
# Pallas kernel: one grid step = BB windows x all heads.
#   qkv_ref : (BB, M_, 3*dim)   packed as [q | k | v], channel = h*hd + d
#   bias_ref: (nh, M_, M_) f32  (rel-pos bias; row 0 / col 0 zero) — VMEM-resident
#   mask_ref: (BB, M_, M_)      (optional shifted-window mask, input dtype)
#   o_ref   : (BB, Mq, dim)     lane-dense output, heads packed on the channel axis
# ----------------------------------------------------------------------------
def _wmsa_kernel(qkv_ref, *rest, scale, num_heads, head_dim,
                 has_bias, has_mask, compute_dtype):
    r = list(rest)
    bias_ref = r.pop(0) if has_bias else None
    mask_ref = r.pop(0) if has_mask else None
    o_ref = r.pop(0)

    dim = num_heads * head_dim

    qkv = qkv_ref[...]                                               # (BB, M_, 3*dim)
    # Pre-scale q in f32 (folds the softmax scale into one small multiply), then cast
    # everything to the bf16 MXU fast path; accumulation stays f32 via
    # preferred_element_type.
    q_all = (qkv[:, :, :dim].astype(jnp.float32) * scale).astype(compute_dtype)
    k_all = qkv[:, :, dim:2 * dim].astype(compute_dtype)
    v_all = qkv[:, :, 2 * dim:3 * dim].astype(compute_dtype)

    mask = mask_ref[...].astype(jnp.float32) if has_mask else None   # (BB, M_, M_)

    outs = []
    for h in range(num_heads):                                       # static unroll
        lo = h * head_dim
        q_h = q_all[:, :, lo:lo + head_dim]                          # (BB, M_, hd)
        k_h = k_all[:, :, lo:lo + head_dim]                          # (BB, M_, hd)
        v_h = v_all[:, :, lo:lo + head_dim]                          # (BB, M_, hd)

        # Scores over ALL M_ query rows (row 0 = cls query, discarded at the end).
        s = jnp.einsum('bqd,bkd->bqk', q_h, k_h,
                       preferred_element_type=jnp.float32)           # (BB, M_, M_)
        if has_bias:
            s = s + bias_ref[h][None, :, :]
        if has_mask:
            s = s + mask

        # Softmax over keys, f32 statistics; normalization deferred to the small acc.
        s_max = jnp.max(s, axis=-1, keepdims=True)
        p = jnp.exp(s - s_max)
        denom = jnp.sum(p, axis=-1, keepdims=True)

        acc = jnp.einsum('bqk,bkd->bqd', p.astype(compute_dtype), v_h,
                         preferred_element_type=jnp.float32)         # (BB, M_, hd)
        outs.append(acc * pl.reciprocal(denom, approx=True))

    # One lane-dense packed result; drop the cls-query row once; one full-width store.
    out = jnp.concatenate(outs, axis=-1)                             # (BB, M_, dim)
    o_ref[...] = out[:, 1:, :].astype(o_ref.dtype)


# ----------------------------------------------------------------------------
# Relative position index (identical construction to the PyTorch __init__).
# ----------------------------------------------------------------------------
def _relative_position_index(window_size):
    ws = window_size
    coords = np.stack(np.meshgrid(np.arange(ws), np.arange(ws), indexing="ij"))  # (2,ws,ws)
    coords_flatten = coords.reshape(2, -1)                                        # (2, ws*ws)
    rel = coords_flatten[:, :, None] - coords_flatten[:, None, :]                 # (2, N, N)
    rel = rel.transpose(1, 2, 0).astype(np.int64)                                 # (N, N, 2)
    rel[:, :, 0] += ws - 1
    rel[:, :, 1] += ws - 1
    rel[:, :, 0] *= 2 * ws - 1
    return rel.sum(-1)                                                            # (N, N)


# ----------------------------------------------------------------------------
# VMEM limit / block-size selection.
# ----------------------------------------------------------------------------
def _vmem_limit_bytes():
    phys = None
    try:
        info = pltpu.get_tpu_info()
        for name in ("vmem_capacity_bytes", "vmem_size_bytes", "vmem_bytes"):
            v = getattr(info, name, None)
            if v:
                phys = int(v)
                break
    except Exception:
        phys = None
    if phys is None:
        phys = 64 * 1024 * 1024          # conservative: v7x physical VMEM per core
    # ~25% headroom; never below the common scoped default, never near v5e/v6e physical.
    return max(32 * 1024 * 1024, min(phys * 3 // 4, 112 * 1024 * 1024))


def _choose_block(B_, nW, per_win_bytes, budget_bytes, max_bb):
    """Largest BB <= target dividing B_ (and compatible with the mask period nW)."""
    target = max(1, min(max_bb, budget_bytes // max(per_win_bytes, 1)))
    target = min(target, max(1, B_ // 2))     # keep grid >= 2 for the v7x dual-TC split
    best = 1
    for d in range(1, min(B_, target) + 1):
        if B_ % d:
            continue
        if nW is not None and (nW % d != 0 and d % nW != 0):
            continue
        best = d
    return best


# ----------------------------------------------------------------------------
# Wrapper: only free reshapes / tiny parameter gathers in plain JAX.
# ----------------------------------------------------------------------------
def window_attention_forward(qkv, *, dim, num_heads, window_size=7, rel_pos=False,
                             rel_pos_table=None, mask=None, qk_scale=None,
                             compute_dtype=jnp.bfloat16, max_block_windows=256):
    B_, M_, C = qkv.shape
    assert C == 3 * dim, "input channels must equal 3*dim"
    head_dim = dim // num_heads
    scale = float(qk_scale) if qk_scale is not None else head_dim ** (-0.5)
    Mq = M_ - 1  # queries exclude the cls token

    # De-duplicated additive bias (nh, M_, M_): row 0 (cls query, discarded) and
    # column 0 (cls key, never biased) stay zero.
    has_bias = bool(rel_pos)
    bias = None
    if has_bias:
        assert Mq == window_size * window_size, "rel_pos requires M_-1 == window_size**2"
        rpi = jnp.asarray(_relative_position_index(window_size).reshape(-1))
        rb = rel_pos_table[rpi].reshape(Mq, Mq, num_heads).transpose(2, 0, 1)
        bias = jnp.zeros((num_heads, M_, M_), jnp.float32)
        bias = bias.at[:, 1:, 1:].add(rb.astype(jnp.float32))

    has_mask = mask is not None
    nW = None
    mask_p = None
    if has_mask:
        nW = mask.shape[0]
        assert B_ % nW == 0, "batch must be a multiple of the number of mask windows"
        # Zero row for the (discarded) cls-query row; ship in the input dtype
        # (-100/0 are exactly representable in bf16) to halve the mask HBM stream.
        mask_p = jnp.pad(mask.astype(qkv.dtype), ((0, 0), (1, 0), (0, 0)))  # (nW, M_, M_)

    # --- VMEM-budget-aware block size -----------------------------------------------
    vmem_limit = _vmem_limit_bytes()
    itemsize = qkv.dtype.itemsize
    per_win = (2 * M_ * C * itemsize            # double-buffered qkv block
               + 2 * Mq * dim * itemsize        # double-buffered out block
               + 3 * M_ * M_ * 4                # live f32 score/prob intermediates
               + 3 * M_ * dim * 2               # bf16 q/k/v working copies
               + 3 * M_ * dim * 4)              # f32 per-head accumulators + packed result
    if has_mask:
        per_win += 2 * M_ * M_ * itemsize + M_ * M_ * 4
    resident = (num_heads * M_ * M_ * 4) if has_bias else 0
    budget = max(per_win, vmem_limit // 2 - resident)
    BB = _choose_block(B_, nW, per_win, budget, max_block_windows)
    grid = (B_ // BB,)

    in_specs = [pl.BlockSpec((BB, M_, C), lambda i: (i, 0, 0))]       # packed qkv block
    args = [qkv]
    if has_bias:
        in_specs.append(pl.BlockSpec((num_heads, M_, M_), lambda i: (0, 0, 0)))
        args.append(bias)                                             # resident bias
    if has_mask:
        if nW % BB == 0:
            n_mask_blocks = nW // BB
            in_specs.append(
                pl.BlockSpec((BB, M_, M_), lambda i: (i % n_mask_blocks, 0, 0)))
            args.append(mask_p)
        else:  # BB % nW == 0: tile once in the wrapper -> resident for the whole grid
            mask_tiled = jnp.tile(mask_p, (BB // nW, 1, 1))
            in_specs.append(pl.BlockSpec((BB, M_, M_), lambda i: (0, 0, 0)))
            args.append(mask_tiled)

    out = pl.pallas_call(
        functools.partial(_wmsa_kernel, scale=scale, num_heads=num_heads,
                          head_dim=head_dim, has_bias=has_bias, has_mask=has_mask,
                          compute_dtype=compute_dtype),
        out_shape=jax.ShapeDtypeStruct((B_, Mq, dim), qkv.dtype),
        grid_spec=pltpu.PrefetchScalarGridSpec(
            num_scalar_prefetch=0,
            grid=grid,
            in_specs=in_specs,
            out_specs=pl.BlockSpec((BB, Mq, dim), lambda i: (i, 0, 0)),
        ),
        compiler_params=pltpu.CompilerParams(
            dimension_semantics=("parallel",),
            vmem_limit_bytes=int(vmem_limit)),
    )(*args)
    return out  # (B_, Mq, dim) — already the PyTorch output layout


# ----------------------------------------------------------------------------
# Pure-JAX reference (mirrors the PyTorch forward) for a correctness check.
# ----------------------------------------------------------------------------
def _reference(qkv, *, dim, num_heads, window_size, rel_pos, rel_pos_table, mask,
               qk_scale=None):
    B_, M_, C = qkv.shape
    head_dim = dim // num_heads
    scale = qk_scale if qk_scale is not None else head_dim ** (-0.5)
    qkv5 = qkv.reshape(B_, M_, 3, num_heads, head_dim).transpose(2, 0, 3, 1, 4)
    q, k, v = qkv5[0, :, :, 1:, :], qkv5[1], qkv5[2]
    q = q * scale
    attn = jnp.einsum("bhqd,bhkd->bhqk", q, k)
    if rel_pos:
        rpi = jnp.asarray(_relative_position_index(window_size).reshape(-1))
        rb = rel_pos_table[rpi].reshape(M_ - 1, M_ - 1, num_heads).transpose(2, 0, 1)
        attn = jnp.concatenate([attn[:, :, :, :1], attn[:, :, :, 1:] + rb[None]], axis=3)
    if mask is not None:
        nW = mask.shape[0]
        attn = attn.reshape(B_ // nW, nW, num_heads, M_ - 1, M_) + mask[None, :, None]
        attn = attn.reshape(-1, num_heads, M_ - 1, M_)
    attn = jax.nn.softmax(attn, axis=-1)
    x = jnp.einsum("bhqk,bhkd->bhqd", attn, v).transpose(0, 2, 1, 3).reshape(B_, M_ - 1, dim)
    return x


if __name__ == "__main__":
    # Small, module-consistent shapes: window_size=3 -> 9 patch tokens + 1 cls = 10 tokens.
    dim = 32
    num_heads = 4
    window_size = 3
    M_ = window_size * window_size + 1        # 10
    C = 3 * dim                                # 96 (packed q/k/v)
    qk_scale = 0.25                            # power-of-two scale (exact in bf16)

    key = jax.random.PRNGKey(0)
    k_qkv, k_tab, k_qkv2, k_msk = jax.random.split(key, 4)
    rel_pos_table = 0.1 * jax.random.normal(
        k_tab, ((2 * window_size - 1) * (2 * window_size - 1), num_heads),
        dtype=jnp.float32)

    def bf16_rounded(k, shape):
        # Keep the f32 path but make the values exactly bf16-representable so the
        # bf16 MXU kernel and the f32 reference stay tightly comparable.
        return jax.random.normal(k, shape, dtype=jnp.float32).astype(jnp.bfloat16).astype(jnp.float32)

    # --- case 1: no shifted-window mask ---
    B_ = 2
    qkv = bf16_rounded(k_qkv, (B_, M_, C))
    out = window_attention_forward(
        qkv, dim=dim, num_heads=num_heads, window_size=window_size,
        rel_pos=True, rel_pos_table=rel_pos_table, mask=None, qk_scale=qk_scale)
    out = jax.block_until_ready(out)
    ref = _reference(qkv, dim=dim, num_heads=num_heads, window_size=window_size,
                     rel_pos=True, rel_pos_table=rel_pos_table, mask=None,
                     qk_scale=qk_scale)
    assert out.shape == (B_, M_ - 1, dim)
    assert jnp.allclose(out, ref, atol=1e-2, rtol=1e-2), "mismatch vs reference (no mask)"

    # --- case 2: shifted-window mask (nW windows, batch = 2*nW) ---
    nW = 2
    B_m = 2 * nW
    qkv_m = bf16_rounded(k_qkv2, (B_m, M_, C))
    mask = jnp.where(jax.random.bernoulli(k_msk, 0.5, (nW, M_ - 1, M_)),
                     jnp.float32(0.0), jnp.float32(-100.0))
    out_m = window_attention_forward(
        qkv_m, dim=dim, num_heads=num_heads, window_size=window_size,
        rel_pos=True, rel_pos_table=rel_pos_table, mask=mask, qk_scale=qk_scale)
    out_m = jax.block_until_ready(out_m)
    ref_m = _reference(qkv_m, dim=dim, num_heads=num_heads, window_size=window_size,
                       rel_pos=True, rel_pos_table=rel_pos_table, mask=mask,
                       qk_scale=qk_scale)
    assert out_m.shape == (B_m, M_ - 1, dim)
    assert jnp.allclose(out_m, ref_m, atol=1e-2, rtol=1e-2), "mismatch vs reference (mask)"

    print("KERNEL_OK")
</pallas_src>

<mosaic_0001>
module attributes {stable_mosaic.version = 11 : i64} {
  func.func @_wmsa_kernel(%arg0: i32, %arg1: memref<1x10x96xf32, #tpu.memory_space<vmem>>, %arg2: memref<4x10x10xf32, #tpu.memory_space<vmem>>, %arg3: memref<1x9x32xf32, #tpu.memory_space<vmem>>) attributes {dimension_semantics = [#tpu.dimension_semantics<parallel>], iteration_bounds = array<i64: 2>, scalar_prefetch = 0 : i64, scratch_operands = 0 : i64, tpu.core_type = #tpu.core_type<tc>, window_params = [{transform_indices = @transform_0, window_bounds = array<i64: 1, 10, 96>}, {pipeline_mode = #tpu.pipeline_mode<synchronous>, transform_indices = @transform_1, window_bounds = array<i64: 4, 10, 10>}, {transform_indices = @transform_2, window_bounds = array<i64: 1, 9, 32>}]} {
    %c0 = arith.constant 0 : index
    %c0_0 = arith.constant 0 : index
    %c0_1 = arith.constant 0 : index
    %0 = vector.load %arg1[%c0, %c0_0, %c0_1] : memref<1x10x96xf32, #tpu.memory_space<vmem>>, vector<1x10x96xf32>
    %1 = vector.extract_strided_slice %0 {offsets = [0, 0, 0], sizes = [1, 10, 32], strides = [1, 1, 1]} : vector<1x10x96xf32> to vector<1x10x32xf32>
    %cst = arith.constant 2.500000e-01 : f32
    %2 = vector.broadcast %cst : f32 to vector<1x10x32xf32>
    %3 = arith.mulf %1, %2 : vector<1x10x32xf32>
    %4 = arith.truncf %3 : vector<1x10x32xf32> to vector<1x10x32xbf16>
    %5 = vector.extract_strided_slice %0 {offsets = [0, 0, 32], sizes = [1, 10, 32], strides = [1, 1, 1]} : vector<1x10x96xf32> to vector<1x10x32xf32>
    %6 = arith.truncf %5 : vector<1x10x32xf32> to vector<1x10x32xbf16>
    %7 = vector.extract_strided_slice %0 {offsets = [0, 0, 64], sizes = [1, 10, 32], strides = [1, 1, 1]} : vector<1x10x96xf32> to vector<1x10x32xf32>
    %8 = arith.truncf %7 : vector<1x10x32xf32> to vector<1x10x32xbf16>
    %9 = vector.extract_strided_slice %4 {offsets = [0, 0, 0], sizes = [1, 10, 8], strides = [1, 1, 1]} : vector<1x10x32xbf16> to vector<1x10x8xbf16>
    %10 = vector.extract_strided_slice %6 {offsets = [0, 0, 0], sizes = [1, 10, 8], strides = [1, 1, 1]} : vector<1x10x32xbf16> to vector<1x10x8xbf16>
    %11 = vector.extract_strided_slice %8 {offsets = [0, 0, 0], sizes = [1, 10, 8], strides = [1, 1, 1]} : vector<1x10x32xbf16> to vector<1x10x8xbf16>
    "tpu.trace_start"() <{level = 10 : i32, message = "bqd,bkd->bqk"}> : () -> ()
    %cst_2 = arith.constant dense<0.000000e+00> : vector<1x10x10xf32>
    %12 = tpu.matmul %9, %10, %cst_2 {dimension_numbers = #tpu.dot_dimension_numbers<[2], [2], [1], [1], [0, 0, 0, 1, 1, 1], [0], [0]>} : vector<1x10x8xbf16>, vector<1x10x8xbf16>, vector<1x10x10xf32> -> vector<1x10x10xf32>
    "tpu.trace_stop"() : () -> ()
    %c0_3 = arith.constant 0 : index
    %c0_4 = arith.constant 0 : index
    %c0_5 = arith.constant 0 : index
    %13 = vector.load %arg2[%c0_3, %c0_4, %c0_5] : memref<4x10x10xf32, #tpu.memory_space<vmem>>, vector<1x10x10xf32>
    %14 = vector.shape_cast %13 : vector<1x10x10xf32> to vector<10x10xf32>
    %15 = vector.shape_cast %14 : vector<10x10xf32> to vector<1x10x10xf32>
    %16 = arith.addf %12, %15 : vector<1x10x10xf32>
    %cst_6 = arith.constant dense<0xFF800000> : vector<1x10xf32>
    %17 = vector.multi_reduction <maximumf>, %16, %cst_6 [2] : vector<1x10x10xf32> to vector<1x10xf32>
    %18 = vector.shape_cast %17 : vector<1x10xf32> to vector<1x10x1xf32>
    %19 = vector.broadcast %18 : vector<1x10x1xf32> to vector<1x10x10xf32>
    %20 = arith.subf %16, %19 : vector<1x10x10xf32>
    %21 = math.exp %20 : vector<1x10x10xf32>
    %cst_7 = arith.constant dense<0.000000e+00> : vector<1x10xf32>
    %22 = vector.multi_reduction <add>, %21, %cst_7 [2] : vector<1x10x10xf32> to vector<1x10xf32>
    %23 = vector.shape_cast %22 : vector<1x10xf32> to vector<1x10x1xf32>
    %24 = arith.truncf %21 : vector<1x10x10xf32> to vector<1x10x10xbf16>
    "tpu.trace_start"() <{level = 10 : i32, message = "bqk,bkd->bqd"}> : () -> ()
    %cst_8 = arith.constant dense<0.000000e+00> : vector<1x10x8xf32>
    %25 = tpu.matmul %24, %11, %cst_8 {dimension_numbers = #tpu.dot_dimension_numbers<[2], [1], [1], [2], [0, 0, 0, 1, 1, 2], [0], [0]>} : vector<1x10x10xbf16>, vector<1x10x8xbf16>, vector<1x10x8xf32> -> vector<1x10x8xf32>
    "tpu.trace_stop"() : () -> ()
    %26 = tpu.reciprocal %23 {approx = true} : vector<1x10x1xf32> -> vector<1x10x1xf32>
    %27 = vector.broadcast %26 : vector<1x10x1xf32> to vector<1x10x8xf32>
    %28 = arith.mulf %25, %27 : vector<1x10x8xf32>
    %29 = vector.extract_strided_slice %4 {offsets = [0, 0, 8], sizes = [1, 10, 8], strides = [1, 1, 1]} : vector<1x10x32xbf16> to vector<1x10x8xbf16>
    %30 = vector.extract_strided_slice %6 {offsets = [0, 0, 8], sizes = [1, 10, 8], strides = [1, 1, 1]} : vector<1x10x32xbf16> to vector<1x10x8xbf16>
    %31 = vector.extract_strided_slice %8 {offsets = [0, 0, 8], sizes = [1, 10, 8], strides = [1, 1, 1]} : vector<1x10x32xbf16> to vector<1x10x8xbf16>
    "tpu.trace_start"() <{level = 10 : i32, message = "bqd,bkd->bqk"}> : () -> ()
    %cst_9 = arith.constant dense<0.000000e+00> : vector<1x10x10xf32>
    %32 = tpu.matmul %29, %30, %cst_9 {dimension_numbers = #tpu.dot_dimension_numbers<[2], [2], [1], [1], [0, 0, 0, 1, 1, 1], [0], [0]>} : vector<1x10x8xbf16>, vector<1x10x8xbf16>, vector<1x10x10xf32> -> vector<1x10x10xf32>
    "tpu.trace_stop"() : () -> ()
    %c1 = arith.constant 1 : index
    %c0_10 = arith.constant 0 : index
    %c0_11 = arith.constant 0 : index
    %33 = vector.load %arg2[%c1, %c0_10, %c0_11] : memref<4x10x10xf32, #tpu.memory_space<vmem>>, vector<1x10x10xf32>
    %34 = vector.shape_cast %33 : vector<1x10x10xf32> to vector<10x10xf32>
    %35 = vector.shape_cast %34 : vector<10x10xf32> to vector<1x10x10xf32>
    %36 = arith.addf %32, %35 : vector<1x10x10xf32>
    %cst_12 = arith.constant dense<0xFF800000> : vector<1x10xf32>
    %37 = vector.multi_reduction <maximumf>, %36, %cst_12 [2] : vector<1x10x10xf32> to vector<1x10xf32>
    %38 = vector.shape_cast %37 : vector<1x10xf32> to vector<1x10x1xf32>
    %39 = vector.broadcast %38 : vector<1x10x1xf32> to vector<1x10x10xf32>
    %40 = arith.subf %36, %39 : vector<1x10x10xf32>
    %41 = math.exp %40 : vector<1x10x10xf32>
    %cst_13 = arith.constant dense<0.000000e+00> : vector<1x10xf32>
    %42 = vector.multi_reduction <add>, %41, %cst_13 [2] : vector<1x10x10xf32> to vector<1x10xf32>
    %43 = vector.shape_cast %42 : vector<1x10xf32> to vector<1x10x1xf32>
    %44 = arith.truncf %41 : vector<1x10x10xf32> to vector<1x10x10xbf16>
    "tpu.trace_start"() <{level = 10 : i32, message = "bqk,bkd->bqd"}> : () -> ()
    %cst_14 = arith.constant dense<0.000000e+00> : vector<1x10x8xf32>
    %45 = tpu.matmul %44, %31, %cst_14 {dimension_numbers = #tpu.dot_dimension_numbers<[2], [1], [1], [2], [0, 0, 0, 1, 1, 2], [0], [0]>} : vector<1x10x10xbf16>, vector<1x10x8xbf16>, vector<1x10x8xf32> -> vector<1x10x8xf32>
    "tpu.trace_stop"() : () -> ()
    %46 = tpu.reciprocal %43 {approx = true} : vector<1x10x1xf32> -> vector<1x10x1xf32>
    %47 = vector.broadcast %46 : vector<1x10x1xf32> to vector<1x10x8xf32>
    %48 = arith.mulf %45, %47 : vector<1x10x8xf32>
    %49 = vector.extract_strided_slice %4 {offsets = [0, 0, 16], sizes = [1, 10, 8], strides = [1, 1, 1]} : vector<1x10x32xbf16> to vector<1x10x8xbf16>
    %50 = vector.extract_strided_slice %6 {offsets = [0, 0, 16], sizes = [1, 10, 8], strides = [1, 1, 1]} : vector<1x10x32xbf16> to vector<1x10x8xbf16>
    %51 = vector.extract_strided_slice %8 {offsets = [0, 0, 16], sizes = [1, 10, 8], strides = [1, 1, 1]} : vector<1x10x32xbf16> to vector<1x10x8xbf16>
    "tpu.trace_start"() <{level = 10 : i32, message = "bqd,bkd->bqk"}> : () -> ()
    %cst_15 = arith.constant dense<0.000000e+00> : vector<1x10x10xf32>
    %52 = tpu.matmul %49, %50, %cst_15 {dimension_numbers = #tpu.dot_dimension_numbers<[2], [2], [1], [1], [0, 0, 0, 1, 1, 1], [0], [0]>} : vector<1x10x8xbf16>, vector<1x10x8xbf16>, vector<1x10x10xf32> -> vector<1x10x10xf32>
    "tpu.trace_stop"() : () -> ()
    %c2 = arith.constant 2 : index
    %c0_16 = arith.constant 0 : index
    %c0_17 = arith.constant 0 : index
    %53 = vector.load %arg2[%c2, %c0_16, %c0_17] : memref<4x10x10xf32, #tpu.memory_space<vmem>>, vector<1x10x10xf32>
    %54 = vector.shape_cast %53 : vector<1x10x10xf32> to vector<10x10xf32>
    %55 = vector.shape_cast %54 : vector<10x10xf32> to vector<1x10x10xf32>
    %56 = arith.addf %52, %55 : vector<1x10x10xf32>
    %cst_18 = arith.constant dense<0xFF800000> : vector<1x10xf32>
    %57 = vector.multi_reduction <maximumf>, %56, %cst_18 [2] : vector<1x10x10xf32> to vector<1x10xf32>
    %58 = vector.shape_cast %57 : vector<1x10xf32> to vector<1x10x1xf32>
    %59 = vector.broadcast %58 : vector<1x10x1xf32> to vector<1x10x10xf32>
    %60 = arith.subf %56, %59 : vector<1x10x10xf32>
    %61 = math.exp %60 : vector<1x10x10xf32>
    %cst_19 = arith.constant dense<0.000000e+00> : vector<1x10xf32>
    %62 = vector.multi_reduction <add>, %61, %cst_19 [2] : vector<1x10x10xf32> to vector<1x10xf32>
    %63 = vector.shape_cast %62 : vector<1x10xf32> to vector<1x10x1xf32>
    %64 = arith.truncf %61 : vector<1x10x10xf32> to vector<1x10x10xbf16>
    "tpu.trace_start"() <{level = 10 : i32, message = "bqk,bkd->bqd"}> : () -> ()
    %cst_20 = arith.constant dense<0.000000e+00> : vector<1x10x8xf32>
    %65 = tpu.matmul %64, %51, %cst_20 {dimension_numbers = #tpu.dot_dimension_numbers<[2], [1], [1], [2], [0, 0, 0, 1, 1, 2], [0], [0]>} : vector<1x10x10xbf16>, vector<1x10x8xbf16>, vector<1x10x8xf32> -> vector<1x10x8xf32>
    "tpu.trace_stop"() : () -> ()
    %66 = tpu.reciprocal %63 {approx = true} : vector<1x10x1xf32> -> vector<1x10x1xf32>
    %67 = vector.broadcast %66 : vector<1x10x1xf32> to vector<1x10x8xf32>
    %68 = arith.mulf %65, %67 : vector<1x10x8xf32>
    %69 = vector.extract_strided_slice %4 {offsets = [0, 0, 24], sizes = [1, 10, 8], strides = [1, 1, 1]} : vector<1x10x32xbf16> to vector<1x10x8xbf16>
    %70 = vector.extract_strided_slice %6 {offsets = [0, 0, 24], sizes = [1, 10, 8], strides = [1, 1, 1]} : vector<1x10x32xbf16> to vector<1x10x8xbf16>
    %71 = vector.extract_strided_slice %8 {offsets = [0, 0, 24], sizes = [1, 10, 8], strides = [1, 1, 1]} : vector<1x10x32xbf16> to vector<1x10x8xbf16>
    "tpu.trace_start"() <{level = 10 : i32, message = "bqd,bkd->bqk"}> : () -> ()
    %cst_21 = arith.constant dense<0.000000e+00> : vector<1x10x10xf32>
    %72 = tpu.matmul %69, %70, %cst_21 {dimension_numbers = #tpu.dot_dimension_numbers<[2], [2], [1], [1], [0, 0, 0, 1, 1, 1], [0], [0]>} : vector<1x10x8xbf16>, vector<1x10x8xbf16>, vector<1x10x10xf32> -> vector<1x10x10xf32>
    "tpu.trace_stop"() : () -> ()
    %c3 = arith.constant 3 : index
    %c0_22 = arith.constant 0 : index
    %c0_23 = arith.constant 0 : index
    %73 = vector.load %arg2[%c3, %c0_22, %c0_23] : memref<4x10x10xf32, #tpu.memory_space<vmem>>, vector<1x10x10xf32>
    %74 = vector.shape_cast %73 : vector<1x10x10xf32> to vector<10x10xf32>
    %75 = vector.shape_cast %74 : vector<10x10xf32> to vector<1x10x10xf32>
    %76 = arith.addf %72, %75 : vector<1x10x10xf32>
    %cst_24 = arith.constant dense<0xFF800000> : vector<1x10xf32>
    %77 = vector.multi_reduction <maximumf>, %76, %cst_24 [2] : vector<1x10x10xf32> to vector<1x10xf32>
    %78 = vector.shape_cast %77 : vector<1x10xf32> to vector<1x10x1xf32>
    %79 = vector.broadcast %78 : vector<1x10x1xf32> to vector<1x10x10xf32>
    %80 = arith.subf %76, %79 : vector<1x10x10xf32>
    %81 = math.exp %80 : vector<1x10x10xf32>
    %cst_25 = arith.constant dense<0.000000e+00> : vector<1x10xf32>
    %82 = vector.multi_reduction <add>, %81, %cst_25 [2] : vector<1x10x10xf32> to vector<1x10xf32>
    %83 = vector.shape_cast %82 : vector<1x10xf32> to vector<1x10x1xf32>
    %84 = arith.truncf %81 : vector<1x10x10xf32> to vector<1x10x10xbf16>
    "tpu.trace_start"() <{level = 10 : i32, message = "bqk,bkd->bqd"}> : () -> ()
    %cst_26 = arith.constant dense<0.000000e+00> : vector<1x10x8xf32>
    %85 = tpu.matmul %84, %71, %cst_26 {dimension_numbers = #tpu.dot_dimension_numbers<[2], [1], [1], [2], [0, 0, 0, 1, 1, 2], [0], [0]>} : vector<1x10x10xbf16>, vector<1x10x8xbf16>, vector<1x10x8xf32> -> vector<1x10x8xf32>
    "tpu.trace_stop"() : () -> ()
    %86 = tpu.reciprocal %83 {approx = true} : vector<1x10x1xf32> -> vector<1x10x1xf32>
    %87 = vector.broadcast %86 : vector<1x10x1xf32> to vector<1x10x8xf32>
    %88 = arith.mulf %85, %87 : vector<1x10x8xf32>
    %89 = tpu.concatenate %28, %48, %68, %88 in 2 : vector<1x10x8xf32>, vector<1x10x8xf32>, vector<1x10x8xf32>, vector<1x10x8xf32> -> vector<1x10x32xf32>
    %90 = vector.extract_strided_slice %89 {offsets = [0, 1, 0], sizes = [1, 9, 32], strides = [1, 1, 1]} : vector<1x10x32xf32> to vector<1x9x32xf32>
    %c0_27 = arith.constant 0 : index
    %c0_28 = arith.constant 0 : index
    %c0_29 = arith.constant 0 : index
    %91 = vector.load %arg3[%c0_27, %c0_28, %c0_29] : memref<1x9x32xf32, #tpu.memory_space<vmem>>, vector<1x9x32xf32>
    tpu.vector_store %arg3[%c0_27, %c0_28, %c0_29], %90 {strides = array<i32>} : memref<1x9x32xf32, #tpu.memory_space<vmem>>, vector<1x9x32xf32>,
    return
  }
  func.func @transform_0(%arg0: i32) -> (i32, i32, i32) {
    %c0_i32 = arith.constant 0 : i32
    %c0_i32_0 = arith.constant 0 : i32
    %c0_i32_1 = arith.constant 0 : i32
    return %arg0, %c0_i32, %c0_i32_0 : i32, i32, i32
  }
  func.func @transform_1(%arg0: i32) -> (i32, i32, i32) {
    %c0_i32 = arith.constant 0 : i32
    %c0_i32_0 = arith.constant 0 : i32
    %c0_i32_1 = arith.constant 0 : i32
    %c0_i32_2 = arith.constant 0 : i32
    return %c0_i32, %c0_i32_0, %c0_i32_1 : i32, i32, i32
  }
  func.func @transform_2(%arg0: i32) -> (i32, i32, i32) {
    %c0_i32 = arith.constant 0 : i32
    %c0_i32_0 = arith.constant 0 : i32
    %c0_i32_1 = arith.constant 0 : i32
    return %arg0, %c0_i32, %c0_i32_0 : i32, i32, i32
  }
}

</mosaic_0001>

<llo_original>
// kernel: tpu_custom_call.1
$region0: #{tpu_custom_call.1}
  #allocation0 [shape = 'u32[]', space=smem, size = 0x4, offset = 0x4, fixed_abs, tag = 'smem constant byte address 0x4 - core index']
  #allocation1 [shape = 'u32[144,128]{1,0:T(1,128)}', space=vmem, size = 0x12000, scoped, tag = 'internal scratch']
  %s0 = inlined_call_operand.vmem [shape: f32[2,10,96], index: 0, kind: input, shape index: {}]
  %s1 = inlined_call_operand.vmem [shape: f32[4,10,10], index: 1, kind: input, shape index: {}]
  %s2 = inlined_call_operand.vmem [shape: f32[2,9,32], index: 2, kind: output, shape index: {}]
  %s3 = sld [smem:[#allocation0]]
  $region41: #{tpu_custom_call.1} parent=0
    _
  %s5 = ssub.s32 1, %s3
  %s6 = scalar_select 0, %s5, %s3
  loop: start=0, step=1, limit=4
  $region2: #{tpu_custom_call.1} parent=0 // loop_pre_header
    _
  $region3: #{tpu_custom_call.1} parent=0 // loop_header
    %s8 = sphi 0, %s12
    %p9 = scmp.ge.s32.totalorder %s8, 4
    %s18 = sphi 0, %s20
    %s21 = sphi 0, %s18
    %s22 = sphi 0, %s21
    %s38 = sphi 0, %s22
    %s42 = sphi 0, %s42
    %s44 = sphi 0, %s42
    %s45 = sphi 0, %s44
    %s59 = sphi 0, %s45
    %s65 = sphi 0, %s67
    %s68 = sphi 0, %s65
    %s69 = sphi 0, %s68
    %s85 = sphi 0, %s69
  $region4: #{tpu_custom_call.1} parent=0 // loop_header_branch
    %11 = sbr.rel (%p9) target = $region8
  $region5: #{tpu_custom_call.1} parent=0 // loop_body
    %s13 = ssub.s32 %s8, 1
    %s14 = ssub.s32 %s8, 2
    %s15 = sadd.s32 %s8, 1
    %s16 = ssub.s32 %s8, %s15
    %p17 = scmp.eq.s32.totalorder %s16, 0
    %s19 = sadd.s32 %s18, 1
    %s20 = scalar_select %p17, %s18, %s19
    %p23 = pneg %p17
    %p24 = scmp.eq.s32.totalorder %s8, 1
    %p25 = por %p23, %p24
    %p26 = scmp.ne.s32.totalorder %s18, %s21
    %p27 = scmp.eq.s32.totalorder %s8, 0
    %p28 = por %p26, %p27
    %p29 = scmp.ne.s32.totalorder %s18, %s21
    %p30 = scmp.eq.s32.totalorder %s13, 1
    %p31 = por %p29, %p30
    %p32 = scmp.ne.s32.totalorder %s21, %s22
    %p33 = scmp.eq.s32.totalorder %s13, 0
    %p34 = por %p32, %p33
    %p35 = scmp.ne.s32.totalorder %s21, %s22
    %p36 = scmp.eq.s32.totalorder %s14, 1
    %p37 = por %p35, %p36
    %p39 = scmp.ne.s32.totalorder %s22, %s38
    %p40 = scmp.eq.s32.totalorder %s14, 0
    %p41 = por %p39, %p40
    %s43 = sadd.s32 %s42, 1
    %p46 = scmp.eq.s32.totalorder %s8, 1
    %p47 = scmp.ne.s32.totalorder %s42, %s44
    %p48 = scmp.eq.s32.totalorder %s8, 0
    %p49 = por %p47, %p48
    %p50 = scmp.ne.s32.totalorder %s42, %s44
    %p51 = scmp.eq.s32.totalorder %s13, 1
    %p52 = por %p50, %p51
    %p53 = scmp.ne.s32.totalorder %s44, %s45
    %p54 = scmp.eq.s32.totalorder %s13, 0
    %p55 = por %p53, %p54
    %p56 = scmp.ne.s32.totalorder %s44, %s45
    %p57 = scmp.eq.s32.totalorder %s14, 1
    %p58 = por %p56, %p57
    %p60 = scmp.ne.s32.totalorder %s45, %s59
    %p61 = scmp.eq.s32.totalorder %s14, 0
    %p62 = por %p60, %p61
    %s63 = ssub.s32 %s8, %s15
    %p64 = scmp.eq.s32.totalorder %s63, 0
    %s66 = sadd.s32 %s65, 1
    %s67 = scalar_select %p64, %s65, %s66
    %p70 = pneg %p64
    %p71 = scmp.eq.s32.totalorder %s8, 1
    %p72 = por %p70, %p71
    %p73 = scmp.ne.s32.totalorder %s65, %s68
    %p74 = scmp.eq.s32.totalorder %s8, 0
    %p75 = por %p73, %p74
    %p76 = scmp.ne.s32.totalorder %s65, %s68
    %p77 = scmp.eq.s32.totalorder %s13, 1
    %p78 = por %p76, %p77
    %p79 = scmp.ne.s32.totalorder %s68, %s69
    %p80 = scmp.eq.s32.totalorder %s13, 0
    %p81 = por %p79, %p80
    %p82 = scmp.ne.s32.totalorder %s68, %s69
    %p83 = scmp.eq.s32.totalorder %s14, 1
    %p84 = por %p82, %p83
    %p86 = scmp.ne.s32.totalorder %s69, %s85
    %p87 = scmp.eq.s32.totalorder %s14, 0
    %p88 = por %p86, %p87
    %p89 = scmp.le.s32.totalorder 1, %s8
    %p90 = scmp.lt.s32.totalorder %s8, 3
    %p91 = pnand %p89, %p90
    %p92 = pneg %p91
    // Predicated region
    $region9: #{tpu_custom_call.1} parent=5 // pred_check
      _
    $region10: #{tpu_custom_call.1} parent=5 // pred_check_branch
      %94 = sbr.rel (%p91) target = $region12
    $region11: #{tpu_custom_call.1} parent=5 // pred_region
      %s95 = ssub.s32 %s8, 1
      // Predicated region
      $region13: #{tpu_custom_call.1} parent=11 // pred_check
        %p96 = pneg %p55
      $region14: #{tpu_custom_call.1} parent=11 // pred_check_branch
        %98 = sbr.rel (%p96) target = $region16
      $region15: #{tpu_custom_call.1} parent=11 // pred_region
        _
      $region16: #{tpu_custom_call.1} parent=11 // pred_fallthru
        _
    $region12: #{tpu_custom_call.1} parent=5 // pred_fallthru
      _
    %p99 = scmp.lt.s32.totalorder %s8, 2
    // Predicated region
    $region17: #{tpu_custom_call.1} parent=5 // pred_check
      %p100 = pneg %p99
    $region18: #{tpu_custom_call.1} parent=5 // pred_check_branch
      %102 = sbr.rel (%p100) target = $region20
    $region19: #{tpu_custom_call.1} parent=5 // pred_region
      // Predicated region
      $region21: #{tpu_custom_call.1} parent=19 // pred_check
        %p103 = pneg %p28
      $region22: #{tpu_custom_call.1} parent=19 // pred_check_branch
        %105 = sbr.rel (%p103) target = $region24
      $region23: #{tpu_custom_call.1} parent=19 // pred_region
        %p106 = scmp.lt.s32.totalorder %s8, 1
        %s107 = scalar_select %p106, %s8, 1
        %s108 = smul.addr %s107, 2
        %s109 = smul.addr %s108, 8
        %s110 = scalar_lea.vmem %s0, %s109
      $region24: #{tpu_custom_call.1} parent=19 // pred_fallthru
        _
    $region20: #{tpu_custom_call.1} parent=5 // pred_fallthru
      _
    %p111 = scmp.le.s32.totalorder 1, %s8
    %p112 = scmp.lt.s32.totalorder %s8, 3
    %p113 = pnand %p111, %p112
    %p114 = pneg %p113
    // Predicated region
    $region25: #{tpu_custom_call.1} parent=5 // pred_check
      _
    $region26: #{tpu_custom_call.1} parent=5 // pred_check_branch
      %116 = sbr.rel (%p113) target = $region28
    $region27: #{tpu_custom_call.1} parent=5 // pred_region
      %s117 = ssub.s32 %s8, 1
      %p118 = scmp.lt.s32.totalorder %s13, 1
      %s119 = scalar_select %p118, %s13, 1
      %s120 = smul.addr %s119, 2
      %s121 = smul.addr %s120, 8
      %s122 = scalar_lea.vmem %s0, %s121
      %p123 = pneg %p34
      %p124 = pneg %p31
      %p125 = pneg %p55
      %p126 = pneg %p52
      %p127 = pneg %p81
      %p128 = pneg %p78
      %p129 = scmp.lt.s32.totalorder %s13, 1
      %s130 = scalar_select %p129, %s13, 1
      %s131 = smul.addr %s130, 2
      %s132 = smul.addr %s131, 8
      %s133 = scalar_lea.vmem %s2, %s132
      %p134 = scmp.lt.s32.totalorder %s13, 1
      %s135 = scalar_select %p134, %s13, 1
      %s136 = smul.addr %s135, 2
      %s137 = smul.addr %s136, 8
      %s138 = scalar_lea.vmem %s0, %s137
      %p139 = scmp.lt.s32.totalorder %s13, 1
      %s140 = scalar_select %p139, %s13, 1
      %s141 = smul.addr %s140, 2
      %s142 = smul.addr %s141, 8
      %s143 = scalar_lea.vmem %s2, %s142
      %v145 = vld [vmem:[%s138] sm:$0xff]
      %v146 = vld [vmem:[%s138 + $0x8] sm:$0x3]
      %v147 = vmul.f32 %v145, 0.25
      %v148 = vmul.f32 %v146, 0.25
      %v149 = vpack.c.bf16 %v148, %v147
      %v150 = vpack.c.bf16 %v146, %v145
      %v151 = vld [vmem:[%s1] sm:$0xff]
      %v152 = vld [vmem:[%s1 + $0x8] sm:$0x3]
      %154 = vrot.lane.b32.xlu0 %v150, 96
      %v155 = vpop.permute.xlu0 %154
      %vm156 = vcmask 64512
      %v158 = vsel %vm156, %v149, 0
      %v161 = vsel %vm156, %v155, 0
      %163 = vmatprep.subr.bf16.mxu0 0
      %164 = vmatpush1.bf16.xpose.msra.mxu0 %v161
      %165 = vmatprep.subr.bf16.mxu0 0
      %166 = vmatpush1.bf16.xpose.msra.mxu0 0
      %167 = vmatprep.subr.bf16.mxu0 0
      %168 = vmatpush1.bf16.xpose.msra.mxu0 0
      %169 = vmatprep.subr.bf16.mxu0 0
      %170 = vmatpush1.bf16.xpose.msra.mxu0 0
      %171 = vmatprep.subr.bf16.mxu0 0
      %172 = vmatpush1.bf16.xpose.msra.mxu0 0
      %173 = vmatprep.subr.bf16.mxu0 0
      %174 = vmatpush1.bf16.xpose.msra.mxu0 0
      %175 = vmatprep.subr.bf16.mxu0 0
      %176 = vmatpush1.bf16.xpose.msra.mxu0 0
      %177 = vmatprep.subr.bf16.mxu0 0
      %178 = vmatpush1.bf16.xpose.msra.mxu0 0
      %179 = vmatprep.subr.bf16.mxu0 0
      %180 = vmatpush1.bf16.xpose.msra.mxu0 0
      %181 = vmatprep.subr.bf16.mxu0 0
      %182 = vmatpush1.bf16.xpose.msra.mxu0 0
      %183 = vmatprep.subr.bf16.mxu0 0
      %184 = vmatpush1.bf16.xpose.msra.mxu0 0
      %185 = vmatprep.subr.bf16.mxu0 0
      %186 = vmatpush1.bf16.xpose.msra.mxu0 0
      %187 = vmatprep.subr.bf16.mxu0 0
      %188 = vmatpush1.bf16.xpose.msra.mxu0 0
      %189 = vmatprep.subr.bf16.mxu0 0
      %190 = vmatpush1.bf16.xpose.msra.mxu0 0
      %191 = vmatprep.subr.bf16.mxu0 0
      %192 = vmatpush1.bf16.xpose.msra.mxu0 0
      %193 = vmatprep.subr.bf16.mxu0 0
      %194 = vmatpush1.bf16.xpose.msra.mxu0 0
      %195 = vmatprep.mubr.bf16.mxu0 0
      %196 = vmatmul.mubr.bf16.gmra.mrb[0].mxu0 %v158
      %v197 = vpop.f32.mrb[0].mxu0
      %v198 = vadd.f32 %v151, %v197
      %v199 = vpop.f32.mrb[0].mxu0
      %v200 = vpop.f32.mrb[0].mxu0
      %v201 = vadd.f32 %v152, %v200
      %v202 = vpop.f32.mrb[0].mxu0
      %203 = vdwg.mxu0
      %vm204 = vcmask 80896
      %v205 = vsel %vm204, %v198, -inf
      %206 = vmax.xlane.f32.xlu0 %v205
      %v207 = vpop.xlane.xlu0 %206
      %vm208 = vcmask 74752
      %v209 = vsel %vm208, %v201, -inf
      %210 = vmax.xlane.f32.xlu0 %v209
      %v211 = vpop.xlane.xlu0 %210
      %v212 = vsub.f32 %v198, %v207
      %v213 = vsub.f32 %v201, %v211
      %v214 = vmul.f32 %v212, 1.442695
      %v215 = vpow.pop %v214
      %v216 = vmul.f32 %v213, 1.442695
      %v217 = vpow.pop %v216
      %v218 = vsel %vm204, %v215, 0.0
      %219 = vadd.xlane.f32.xlu0 %v218
      %v220 = vpop.xlane.xlu0 %219
      %v221 = vsel %vm208, %v217, 0.0
      %222 = vadd.xlane.f32.xlu0 %v221
      %v223 = vpop.xlane.xlu0 %222
      %v224 = vpack.c.bf16 %v217, %v215
      %225 = vrot.lane.b32.xlu0 %v150, 64
      %v226 = vpop.permute.xlu0 %225
      %v228 = vsel %vm204, %v224, 0
      %vm230 = vcmask 1044480
      %v232 = vsel %vm230, %v226, 0
      %234 = vmatprep.subr.bf16.mxu0 0
      %235 = vmatpush1.bf16.msra.mxu0 %v232
      %236 = vmatprep.subr.bf16.mxu0 0
      %237 = vmatpush1.bf16.msra.mxu0 0
      %238 = vmatprep.subr.bf16.mxu0 0
      %239 = vmatpush1.bf16.msra.mxu0 0
      %240 = vmatprep.subr.bf16.mxu0 0
      %241 = vmatpush1.bf16.msra.mxu0 0
      %242 = vmatprep.subr.bf16.mxu0 0
      %243 = vmatpush1.bf16.msra.mxu0 0
      %244 = vmatprep.subr.bf16.mxu0 0
      %245 = vmatpush1.bf16.msra.mxu0 0
      %246 = vmatprep.subr.bf16.mxu0 0
      %247 = vmatpush1.bf16.msra.mxu0 0
      %248 = vmatprep.subr.bf16.mxu0 0
      %249 = vmatpush1.bf16.msra.mxu0 0
      %250 = vmatprep.subr.bf16.mxu0 0
      %251 = vmatpush1.bf16.msra.mxu0 0
      %252 = vmatprep.subr.bf16.mxu0 0
      %253 = vmatpush1.bf16.msra.mxu0 0
      %254 = vmatprep.subr.bf16.mxu0 0
      %255 = vmatpush1.bf16.msra.mxu0 0
      %256 = vmatprep.subr.bf16.mxu0 0
      %257 = vmatpush1.bf16.msra.mxu0 0
      %258 = vmatprep.subr.bf16.mxu0 0
      %259 = vmatpush1.bf16.msra.mxu0 0
      %260 = vmatprep.subr.bf16.mxu0 0
      %261 = vmatpush1.bf16.msra.mxu0 0
      %262 = vmatprep.subr.bf16.mxu0 0
      %263 = vmatpush1.bf16.msra.mxu0 0
      %264 = vmatprep.subr.bf16.mxu0 0
      %265 = vmatpush1.bf16.msra.mxu0 0
      %266 = vmatprep.mubr.bf16.mxu0 0
      %267 = vmatmul.mubr.bf16.gmra.mrb[0].mxu0 %v228
      %v268 = vpop.f32.mrb[0].mxu0
      %v269 = vadd.f32 0.0, %v268
      %v270 = vpop.f32.mrb[0].mxu0
      %v271 = vpop.f32.mrb[0].mxu0
      %v272 = vadd.f32 0.0, %v271
      %v273 = vpop.f32.mrb[0].mxu0
      %274 = vdwg.mxu0
      %v275 = vrcp.pop %v220
      %v276 = vrcp.pop %v223
      %v277 = vmul.f32 %v269, %v275
      %v278 = vmul.f32 %v272, %v276
      %s279 = scalar_lea.vmem %s1, 16
      %v280 = vld [vmem:[%s279] sm:$0xff]
      %v281 = vld [vmem:[%s279 + $0x8] sm:$0x3]
      %283 = vrot.lane.b32.xlu0 %v149, 120
      %v284 = vpop.permute.xlu0 %283
      %285 = vrot.lane.b32.xlu0 %v150, 88
      %v286 = vpop.permute.xlu0 %285
      %v288 = vsel %vm156, %v284, 0
      %v291 = vsel %vm156, %v286, 0
      %293 = vmatprep.subr.bf16.mxu0 0
      %294 = vmatpush1.bf16.xpose.msra.mxu0 %v291
      %295 = vmatprep.subr.bf16.mxu0 0
      %296 = vmatpush1.bf16.xpose.msra.mxu0 0
      %297 = vmatprep.subr.bf16.mxu0 0
      %298 = vmatpush1.bf16.xpose.msra.mxu0 0
      %299 = vmatprep.subr.bf16.mxu0 0
      %300 = vmatpush1.bf16.xpose.msra.mxu0 0
      %301 = vmatprep.subr.bf16.mxu0 0
      %302 = vmatpush1.bf16.xpose.msra.mxu0 0
      %303 = vmatprep.subr.bf16.mxu0 0
      %304 = vmatpush1.bf16.xpose.msra.mxu0 0
      %305 = vmatprep.subr.bf16.mxu0 0
      %306 = vmatpush1.bf16.xpose.msra.mxu0 0
      %307 = vmatprep.subr.bf16.mxu0 0
      %308 = vmatpush1.bf16.xpose.msra.mxu0 0
      %309 = vmatprep.subr.bf16.mxu0 0
      %310 = vmatpush1.bf16.xpose.msra.mxu0 0
      %311 = vmatprep.subr.bf16.mxu0 0
      %312 = vmatpush1.bf16.xpose.msra.mxu0 0
      %313 = vmatprep.subr.bf16.mxu0 0
      %314 = vmatpush1.bf16.xpose.msra.mxu0 0
      %315 = vmatprep.subr.bf16.mxu0 0
      %316 = vmatpush1.bf16.xpose.msra.mxu0 0
      %317 = vmatprep.subr.bf16.mxu0 0
      %318 = vmatpush1.bf16.xpose.msra.mxu0 0
      %319 = vmatprep.subr.bf16.mxu0 0
      %320 = vmatpush1.bf16.xpose.msra.mxu0 0
      %321 = vmatprep.subr.bf16.mxu0 0
      %322 = vmatpush1.bf16.xpose.msra.mxu0 0
      %323 = vmatprep.subr.bf16.mxu0 0
      %324 = vmatpush1.bf16.xpose.msra.mxu0 0
      %325 = vmatprep.mubr.bf16.mxu0 0
      %326 = vmatmul.mubr.bf16.gmra.mrb[0].mxu0 %v288
      %v327 = vpop.f32.mrb[0].mxu0
      %v328 = vadd.f32 %v280, %v327
      %v329 = vpop.f32.mrb[0].mxu0
      %v330 = vpop.f32.mrb[0].mxu0
      %v331 = vadd.f32 %v281, %v330
      %v332 = vpop.f32.mrb[0].mxu0
      %333 = vdwg.mxu0
      %v334 = vsel %vm204, %v328, -inf
      %335 = vmax.xlane.f32.xlu0 %v334
      %v336 = vpop.xlane.xlu0 %335
      %v337 = vsel %vm208, %v331, -inf
      %338 = vmax.xlane.f32.xlu0 %v337
      %v339 = vpop.xlane.xlu0 %338
      %v340 = vsub.f32 %v328, %v336
      %v341 = vsub.f32 %v331, %v339
      %v342 = vmul.f32 %v340, 1.442695
      %v343 = vpow.pop %v342
      %v344 = vmul.f32 %v341, 1.442695
      %v345 = vpow.pop %v344
      %v346 = vsel %vm204, %v343, 0.0
      %347 = vadd.xlane.f32.xlu0 %v346
      %v348 = vpop.xlane.xlu0 %347
      %v349 = vsel %vm208, %v345, 0.0
      %350 = vadd.xlane.f32.xlu0 %v349
      %v351 = vpop.xlane.xlu0 %350
      %v352 = vpack.c.bf16 %v345, %v343
      %353 = vrot.lane.b32.xlu0 %v150, 56
      %v354 = vpop.permute.xlu0 %353
      %v356 = vsel %vm204, %v352, 0
      %v359 = vsel %vm230, %v354, 0
      %361 = vmatprep.subr.bf16.mxu0 0
      %362 = vmatpush1.bf16.msra.mxu0 %v359
      %363 = vmatprep.subr.bf16.mxu0 0
      %364 = vmatpush1.bf16.msra.mxu0 0
      %365 = vmatprep.subr.bf16.mxu0 0
      %366 = vmatpush1.bf16.msra.mxu0 0
      %367 = vmatprep.subr.bf16.mxu0 0
      %368 = vmatpush1.bf16.msra.mxu0 0
      %369 = vmatprep.subr.bf16.mxu0 0
      %370 = vmatpush1.bf16.msra.mxu0 0
      %371 = vmatprep.subr.bf16.mxu0 0
      %372 = vmatpush1.bf16.msra.mxu0 0
      %373 = vmatprep.subr.bf16.mxu0 0
      %374 = vmatpush1.bf16.msra.mxu0 0
      %375 = vmatprep.subr.bf16.mxu0 0
      %376 = vmatpush1.bf16.msra.mxu0 0
      %377 = vmatprep.subr.bf16.mxu0 0
      %378 = vmatpush1.bf16.msra.mxu0 0
      %379 = vmatprep.subr.bf16.mxu0 0
      %380 = vmatpush1.bf16.msra.mxu0 0
      %381 = vmatprep.subr.bf16.mxu0 0
      %382 = vmatpush1.bf16.msra.mxu0 0
      %383 = vmatprep.subr.bf16.mxu0 0
      %384 = vmatpush1.bf16.msra.mxu0 0
      %385 = vmatprep.subr.bf16.mxu0 0
      %386 = vmatpush1.bf16.msra.mxu0 0
      %387 = vmatprep.subr.bf16.mxu0 0
      %388 = vmatpush1.bf16.msra.mxu0 0
      %389 = vmatprep.subr.bf16.mxu0 0
      %390 = vmatpush1.bf16.msra.mxu0 0
      %391 = vmatprep.subr.bf16.mxu0 0
      %392 = vmatpush1.bf16.msra.mxu0 0
      %393 = vmatprep.mubr.bf16.mxu0 0
      %394 = vmatmul.mubr.bf16.gmra.mrb[0].mxu0 %v356
      %v395 = vpop.f32.mrb[0].mxu0
      %v396 = vadd.f32 0.0, %v395
      %v397 = vpop.f32.mrb[0].mxu0
      %v398 = vpop.f32.mrb[0].mxu0
      %v399 = vadd.f32 0.0, %v398
      %v400 = vpop.f32.mrb[0].mxu0
      %401 = vdwg.mxu0
      %v402 = vrcp.pop %v348
      %v403 = vrcp.pop %v351
      %v404 = vmul.f32 %v396, %v402
      %v405 = vmul.f32 %v399, %v403
      %s406 = scalar_lea.vmem %s1, 32
      %v407 = vld [vmem:[%s406] sm:$0xff]
      %v408 = vld [vmem:[%s406 + $0x8] sm:$0x3]
      %409 = vrot.lane.b32.xlu0 %v149, 112
      %v410 = vpop.permute.xlu0 %409
      %411 = vrot.lane.b32.xlu0 %v150, 80
      %v412 = vpop.permute.xlu0 %411
      %v414 = vsel %vm156, %v410, 0
      %v417 = vsel %vm156, %v412, 0
      %419 = vmatprep.subr.bf16.mxu0 0
      %420 = vmatpush1.bf16.xpose.msra.mxu0 %v417
      %421 = vmatprep.subr.bf16.mxu0 0
      %422 = vmatpush1.bf16.xpose.msra.mxu0 0
      %423 = vmatprep.subr.bf16.mxu0 0
      %424 = vmatpush1.bf16.xpose.msra.mxu0 0
      %425 = vmatprep.subr.bf16.mxu0 0
      %426 = vmatpush1.bf16.xpose.msra.mxu0 0
      %427 = vmatprep.subr.bf16.mxu0 0
      %428 = vmatpush1.bf16.xpose.msra.mxu0 0
      %429 = vmatprep.subr.bf16.mxu0 0
      %430 = vmatpush1.bf16.xpose.msra.mxu0 0
      %431 = vmatprep.subr.bf16.mxu0 0
      %432 = vmatpush1.bf16.xpose.msra.mxu0 0
      %433 = vmatprep.subr.bf16.mxu0 0
      %434 = vmatpush1.bf16.xpose.msra.mxu0 0
      %435 = vmatprep.subr.bf16.mxu0 0
      %436 = vmatpush1.bf16.xpose.msra.mxu0 0
      %437 = vmatprep.subr.bf16.mxu0 0
      %438 = vmatpush1.bf16.xpose.msra.mxu0 0
      %439 = vmatprep.subr.bf16.mxu0 0
      %440 = vmatpush1.bf16.xpose.msra.mxu0 0
      %441 = vmatprep.subr.bf16.mxu0 0
      %442 = vmatpush1.bf16.xpose.msra.mxu0 0
      %443 = vmatprep.subr.bf16.mxu0 0
      %444 = vmatpush1.bf16.xpose.msra.mxu0 0
      %445 = vmatprep.subr.bf16.mxu0 0
      %446 = vmatpush1.bf16.xpose.msra.mxu0 0
      %447 = vmatprep.subr.bf16.mxu0 0
      %448 = vmatpush1.bf16.xpose.msra.mxu0 0
      %449 = vmatprep.subr.bf16.mxu0 0
      %450 = vmatpush1.bf16.xpose.msra.mxu0 0
      %451 = vmatprep.mubr.bf16.mxu0 0
      %452 = vmatmul.mubr.bf16.gmra.mrb[0].mxu0 %v414
      %v453 = vpop.f32.mrb[0].mxu0
      %v454 = vadd.f32 %v407, %v453
      %v455 = vpop.f32.mrb[0].mxu0
      %v456 = vpop.f32.mrb[0].mxu0
      %v457 = vadd.f32 %v408, %v456
      %v458 = vpop.f32.mrb[0].mxu0
      %459 = vdwg.mxu0
      %v460 = vsel %vm204, %v454, -inf
      %461 = vmax.xlane.f32.xlu0 %v460
      %v462 = vpop.xlane.xlu0 %461
      %v463 = vsel %vm208, %v457, -inf
      %464 = vmax.xlane.f32.xlu0 %v463
      %v465 = vpop.xlane.xlu0 %464
      %v466 = vsub.f32 %v454, %v462
      %v467 = vsub.f32 %v457, %v465
      %v468 = vmul.f32 %v466, 1.442695
      %v469 = vpow.pop %v468
      %v470 = vmul.f32 %v467, 1.442695
      %v471 = vpow.pop %v470
      %v472 = vsel %vm204, %v469, 0.0
      %473 = vadd.xlane.f32.xlu0 %v472
      %v474 = vpop.xlane.xlu0 %473
      %v475 = vsel %vm208, %v471, 0.0
      %476 = vadd.xlane.f32.xlu0 %v475
      %v477 = vpop.xlane.xlu0 %476
      %v478 = vpack.c.bf16 %v471, %v469
      %479 = vrot.lane.b32.xlu0 %v150, 48
      %v480 = vpop.permute.xlu0 %479
      %v482 = vsel %vm204, %v478, 0
      %v485 = vsel %vm230, %v480, 0
      %487 = vmatprep.subr.bf16.mxu0 0
      %488 = vmatpush1.bf16.msra.mxu0 %v485
      %489 = vmatprep.subr.bf16.mxu0 0
      %490 = vmatpush1.bf16.msra.mxu0 0
      %491 = vmatprep.subr.bf16.mxu0 0
      %492 = vmatpush1.bf16.msra.mxu0 0
      %493 = vmatprep.subr.bf16.mxu0 0
      %494 = vmatpush1.bf16.msra.mxu0 0
      %495 = vmatprep.subr.bf16.mxu0 0
      %496 = vmatpush1.bf16.msra.mxu0 0
      %497 = vmatprep.subr.bf16.mxu0 0
      %498 = vmatpush1.bf16.msra.mxu0 0
      %499 = vmatprep.subr.bf16.mxu0 0
      %500 = vmatpush1.bf16.msra.mxu0 0
      %501 = vmatprep.subr.bf16.mxu0 0
      %502 = vmatpush1.bf16.msra.mxu0 0
      %503 = vmatprep.subr.bf16.mxu0 0
      %504 = vmatpush1.bf16.msra.mxu0 0
      %505 = vmatprep.subr.bf16.mxu0 0
      %506 = vmatpush1.bf16.msra.mxu0 0
      %507 = vmatprep.subr.bf16.mxu0 0
      %508 = vmatpush1.bf16.msra.mxu0 0
      %509 = vmatprep.subr.bf16.mxu0 0
      %510 = vmatpush1.bf16.msra.mxu0 0
      %511 = vmatprep.subr.bf16.mxu0 0
      %512 = vmatpush1.bf16.msra.mxu0 0
      %513 = vmatprep.subr.bf16.mxu0 0
      %514 = vmatpush1.bf16.msra.mxu0 0
      %515 = vmatprep.subr.bf16.mxu0 0
      %516 = vmatpush1.bf16.msra.mxu0 0
      %517 = vmatprep.subr.bf16.mxu0 0
      %518 = vmatpush1.bf16.msra.mxu0 0
      %519 = vmatprep.mubr.bf16.mxu0 0
      %520 = vmatmul.mubr.bf16.gmra.mrb[0].mxu0 %v482
      %v521 = vpop.f32.mrb[0].mxu0
      %v522 = vadd.f32 0.0, %v521
      %v523 = vpop.f32.mrb[0].mxu0
      %v524 = vpop.f32.mrb[0].mxu0
      %v525 = vadd.f32 0.0, %v524
      %v526 = vpop.f32.mrb[0].mxu0
      %527 = vdwg.mxu0
      %v528 = vrcp.pop %v474
      %v529 = vrcp.pop %v477
      %v530 = vmul.f32 %v522, %v528
      %v531 = vmul.f32 %v525, %v529
      %s532 = scalar_lea.vmem %s1, 48
      %v533 = vld [vmem:[%s532] sm:$0xff]
      %v534 = vld [vmem:[%s532 + $0x8] sm:$0x3]
      %535 = vrot.lane.b32.xlu0 %v149, 104
      %v536 = vpop.permute.xlu0 %535
      %537 = vrot.lane.b32.xlu0 %v150, 72
      %v538 = vpop.permute.xlu0 %537
      %v540 = vsel %vm156, %v536, 0
      %v543 = vsel %vm156, %v538, 0
      %545 = vmatprep.subr.bf16.mxu0 0
      %546 = vmatpush1.bf16.xpose.msra.mxu0 %v543
      %547 = vmatprep.subr.bf16.mxu0 0
      %548 = vmatpush1.bf16.xpose.msra.mxu0 0
      %549 = vmatprep.subr.bf16.mxu0 0
      %550 = vmatpush1.bf16.xpose.msra.mxu0 0
      %551 = vmatprep.subr.bf16.mxu0 0
      %552 = vmatpush1.bf16.xpose.msra.mxu0 0
      %553 = vmatprep.subr.bf16.mxu0 0
      %554 = vmatpush1.bf16.xpose.msra.mxu0 0
      %555 = vmatprep.subr.bf16.mxu0 0
      %556 = vmatpush1.bf16.xpose.msra.mxu0 0
      %557 = vmatprep.subr.bf16.mxu0 0
      %558 = vmatpush1.bf16.xpose.msra.mxu0 0
      %559 = vmatprep.subr.bf16.mxu0 0
      %560 = vmatpush1.bf16.xpose.msra.mxu0 0
      %561 = vmatprep.subr.bf16.mxu0 0
      %562 = vmatpush1.bf16.xpose.msra.mxu0 0
      %563 = vmatprep.subr.bf16.mxu0 0
      %564 = vmatpush1.bf16.xpose.msra.mxu0 0
      %565 = vmatprep.subr.bf16.mxu0 0
      %566 = vmatpush1.bf16.xpose.msra.mxu0 0
      %567 = vmatprep.subr.bf16.mxu0 0
      %568 = vmatpush1.bf16.xpose.msra.mxu0 0
      %569 = vmatprep.subr.bf16.mxu0 0
      %570 = vmatpush1.bf16.xpose.msra.mxu0 0
      %571 = vmatprep.subr.bf16.mxu0 0
      %572 = vmatpush1.bf16.xpose.msra.mxu0 0
      %573 = vmatprep.subr.bf16.mxu0 0
      %574 = vmatpush1.bf16.xpose.msra.mxu0 0
      %575 = vmatprep.subr.bf16.mxu0 0
      %576 = vmatpush1.bf16.xpose.msra.mxu0 0
      %577 = vmatprep.mubr.bf16.mxu0 0
      %578 = vmatmul.mubr.bf16.gmra.mrb[0].mxu0 %v540
      %v579 = vpop.f32.mrb[0].mxu0
      %v580 = vadd.f32 %v533, %v579
      %v581 = vpop.f32.mrb[0].mxu0
      %v582 = vpop.f32.mrb[0].mxu0
      %v583 = vadd.f32 %v534, %v582
      %v584 = vpop.f32.mrb[0].mxu0
      %585 = vdwg.mxu0
      %v586 = vsel %vm204, %v580, -inf
      %587 = vmax.xlane.f32.xlu0 %v586
      %v588 = vpop.xlane.xlu0 %587
      %v589 = vsel %vm208, %v583, -inf
      %590 = vmax.xlane.f32.xlu0 %v589
      %v591 = vpop.xlane.xlu0 %590
      %v592 = vsub.f32 %v580, %v588
      %v593 = vsub.f32 %v583, %v591
      %v594 = vmul.f32 %v592, 1.442695
      %v595 = vpow.pop %v594
      %v596 = vmul.f32 %v593, 1.442695
      %v597 = vpow.pop %v596
      %v598 = vsel %vm204, %v595, 0.0
      %599 = vadd.xlane.f32.xlu0 %v598
      %v600 = vpop.xlane.xlu0 %599
      %v601 = vsel %vm208, %v597, 0.0
      %602 = vadd.xlane.f32.xlu0 %v601
      %v603 = vpop.xlane.xlu0 %602
      %v604 = vpack.c.bf16 %v597, %v595
      %605 = vrot.lane.b32.xlu0 %v150, 40
      %v606 = vpop.permute.xlu0 %605
      %v608 = vsel %vm204, %v604, 0
      %v611 = vsel %vm230, %v606, 0
      %613 = vmatprep.subr.bf16.mxu0 0
      %614 = vmatpush1.bf16.msra.mxu0 %v611
      %615 = vmatprep.subr.bf16.mxu0 0
      %616 = vmatpush1.bf16.msra.mxu0 0
      %617 = vmatprep.subr.bf16.mxu0 0
      %618 = vmatpush1.bf16.msra.mxu0 0
      %619 = vmatprep.subr.bf16.mxu0 0
      %620 = vmatpush1.bf16.msra.mxu0 0
      %621 = vmatprep.subr.bf16.mxu0 0
      %622 = vmatpush1.bf16.msra.mxu0 0
      %623 = vmatprep.subr.bf16.mxu0 0
      %624 = vmatpush1.bf16.msra.mxu0 0
      %625 = vmatprep.subr.bf16.mxu0 0
      %626 = vmatpush1.bf16.msra.mxu0 0
      %627 = vmatprep.subr.bf16.mxu0 0
      %628 = vmatpush1.bf16.msra.mxu0 0
      %629 = vmatprep.subr.bf16.mxu0 0
      %630 = vmatpush1.bf16.msra.mxu0 0
      %631 = vmatprep.subr.bf16.mxu0 0
      %632 = vmatpush1.bf16.msra.mxu0 0
      %633 = vmatprep.subr.bf16.mxu0 0
      %634 = vmatpush1.bf16.msra.mxu0 0
      %635 = vmatprep.subr.bf16.mxu0 0
      %636 = vmatpush1.bf16.msra.mxu0 0
      %637 = vmatprep.subr.bf16.mxu0 0
      %638 = vmatpush1.bf16.msra.mxu0 0
      %639 = vmatprep.subr.bf16.mxu0 0
      %640 = vmatpush1.bf16.msra.mxu0 0
      %641 = vmatprep.subr.bf16.mxu0 0
      %642 = vmatpush1.bf16.msra.mxu0 0
      %643 = vmatprep.subr.bf16.mxu0 0
      %644 = vmatpush1.bf16.msra.mxu0 0
      %645 = vmatprep.mubr.bf16.mxu0 0
      %646 = vmatmul.mubr.bf16.gmra.mrb[0].mxu0 %v608
      %v647 = vpop.f32.mrb[0].mxu0
      %v648 = vadd.f32 0.0, %v647
      %v649 = vpop.f32.mrb[0].mxu0
      %v650 = vpop.f32.mrb[0].mxu0
      %v651 = vadd.f32 0.0, %v650
      %v652 = vpop.f32.mrb[0].mxu0
      %653 = vdwg.mxu0
      %v654 = vrcp.pop %v600
      %v655 = vrcp.pop %v603
      %v656 = vmul.f32 %v648, %v654
      %v657 = vmul.f32 %v651, %v655
      %660 = vrot.lane.b32.xlu0 %v404, 8
      %v661 = vpop.permute.xlu0 %660
      %662 = vrot.lane.b32.xlu0 %v405, 8
      %v663 = vpop.permute.xlu0 %662
      %668 = vrot.lane.b32.xlu0 %v530, 16
      %v669 = vpop.permute.xlu0 %668
      %670 = vrot.lane.b32.xlu0 %v531, 16
      %v671 = vpop.permute.xlu0 %670
      %676 = vrot.lane.b32.xlu0 %v656, 24
      %v677 = vpop.permute.xlu0 %676
      %678 = vrot.lane.b32.xlu0 %v657, 24
      %v679 = vpop.permute.xlu0 %678
      %v682 = vsel %vm156, %v277, %v661
      %v683 = vsel %vm156, %v278, %v663
      %vm684 = vcmask 130048
      %v685 = vsel %vm684, %v682, %v669
      %v686 = vsel %vm684, %v683, %v671
      %vm687 = vcmask 195584
      %v688 = vsel %vm687, %v685, %v677
      %v689 = vsel %vm687, %v686, %v679
      %vm690 = vcmask 261121
      %691 = vst.msk [vmem:[%s143 - $0x1] sm:$0xfe] %vm690, %v688
      %vm692 = vcmask 254976
      %693 = vst.msk [vmem:[%s143 + $0x7] sm:$0x3] %vm692, %v689
      %p694 = scmp.lt.s32.totalorder %s13, 1
      %s695 = scalar_select %p694, %s13, 1
      %s696 = smul.addr %s695, 2
      %s697 = smul.addr %s696, 8
      %s698 = scalar_lea.vmem %s2, %s697
      // Predicated region
      $region29: #{tpu_custom_call.1} parent=27 // pred_check
        %p699 = pneg %p78
      $region30: #{tpu_custom_call.1} parent=27 // pred_check_branch
        %701 = sbr.rel (%p699) target = $region32
      $region31: #{tpu_custom_call.1} parent=27 // pred_region
        _
      $region32: #{tpu_custom_call.1} parent=27 // pred_fallthru
        _
    $region28: #{tpu_custom_call.1} parent=5 // pred_fallthru
      _
    %p702 = scmp.le.s32.totalorder 2, %s8
    // Predicated region
    $region33: #{tpu_custom_call.1} parent=5 // pred_check
      %p703 = pneg %p702
    $region34: #{tpu_custom_call.1} parent=5 // pred_check_branch
      %705 = sbr.rel (%p703) target = $region36
    $region35: #{tpu_custom_call.1} parent=5 // pred_region
      %s706 = ssub.s32 %s8, 2
      // Predicated region
      $region37: #{tpu_custom_call.1} parent=35 // pred_check
        %p707 = pneg %p84
      $region38: #{tpu_custom_call.1} parent=35 // pred_check_branch
        %709 = sbr.rel (%p707) target = $region40
      $region39: #{tpu_custom_call.1} parent=35 // pred_region
        %p710 = scmp.lt.s32.totalorder %s14, 1
        %s711 = scalar_select %p710, %s14, 1
        %s712 = smul.addr %s711, 2
        %s713 = smul.addr %s712, 8
        %s714 = scalar_lea.vmem %s2, %s713
      $region40: #{tpu_custom_call.1} parent=35 // pred_fallthru
        _
    $region36: #{tpu_custom_call.1} parent=5 // pred_fallthru
      _
  $region6: #{tpu_custom_call.1} parent=0 // loop_footer
    %s12 = sadd.s32 1, %s8
  $region7: #{tpu_custom_call.1} parent=0 // loop_footer_branch
    %7 = sbr.rel target = $region3
  $region8: #{tpu_custom_call.1} parent=0 // loop_exit
    _

</llo_original>
